<compile_context>
chip_gen: v7x
topology: tpu7x:2x2x1
jax: 0.10.0
libtpu: 0.0.40
codegen_flags: <defaults>
</compile_context>

<pallas_src>
import functools

import jax
import jax.numpy as jnp
from jax import lax
from jax.experimental import pallas as pl
from jax.experimental.pallas import tpu as pltpu


def _round_up(a, b):
    return (a + b - 1) // b * b


def _compute_pad(t, kernel_shape, stride):
    if t % stride == 0:
        return max(kernel_shape - stride, 0)
    return max(kernel_shape - t % stride, 0)


def _conv1d_relu_kernel(x_ref, w_ref, b_ref, o_ref, *, k, stride, tt, win, apply_relu):
    """One (batch n, time-tile t) grid step.

    x_ref: (C, T_total)   padded input row for this batch (resident across t tiles)
    w_ref: (k, O_pad, C)  conv weight, tap-major (resident)
    b_ref: (O_pad, 1)     bias, f32 (resident)
    o_ref: (O_pad, TT)    output tile, time on the lane axis
    """
    t_blk = pl.program_id(1)
    # Lane-aligned dynamic window covering all k taps of this output tile.
    start = pl.multiple_of(t_blk * (tt * stride), 128)
    xw = x_ref[:, pl.ds(start, win)]                              # (C, win)

    acc = None
    for j in range(k):                                            # k shifted dots, no im2col
        if stride == 1:
            xj = xw[:, j:j + tt]                                  # (C, TT) static shift
        else:
            xj = lax.slice(xw, (0, j),
                           (xw.shape[0], j + (tt - 1) * stride + 1),
                           (1, stride))                           # (C, TT) static strided
        d = jnp.dot(w_ref[j], xj, preferred_element_type=jnp.float32)   # (O_pad, TT) MXU
        acc = d if acc is None else acc + d

    acc = acc + b_ref[...]                                        # (O_pad, 1) lane broadcast
    if apply_relu:
        acc = jnp.maximum(acc, 0.0)
    o_ref[...] = acc.astype(o_ref.dtype)


@functools.partial(
    jax.jit,
    static_argnames=("kernel_shape", "stride", "padding", "apply_relu", "compute_dtype"),
)
def unit1d_forward(x, weight, bias, *, kernel_shape, stride=1, padding="same",
                   apply_relu=True, compute_dtype=None):
    """Unit1D forward. x: (N, C, T), weight: (O, C, k), bias: (O,) -> (N, O, T_out)."""
    # TODO(synk): only ReLU / identity activations are implemented (module default is F.relu).
    N, C, T = x.shape
    O = weight.shape[0]
    k = kernel_shape
    out_dtype = x.dtype

    if padding == "same":
        pad_t = _compute_pad(T, k, stride)
        pad_f = pad_t // 2
        pad_b = pad_t - pad_f
    else:
        pad_f = pad_b = 0
    T_same = T + pad_f + pad_b
    T_out = (T_same - k) // stride + 1

    # Alignment / tiling choices.
    TT = min(512, _round_up(T_out, 128))                 # time tile (lanes), mult of 128
    T_out_pad = _round_up(T_out, TT)
    n_t = T_out_pad // TT
    O_pad = _round_up(O, 8)                              # sublane alignment for output
    win = _round_up((TT - 1) * stride + k, 128)          # lane-aligned in-kernel window
    T_total = max(T_same, (n_t - 1) * TT * stride + win)

    # Pad input once: zeros serve as both 'same' padding and tile padding.
    x_p = jnp.pad(x, ((0, 0), (0, 0), (pad_f, T_total - T - pad_f)))

    # Weight: (O, C, k) -> tap-major (k, O_pad, C); bias -> (O_pad, 1) f32.
    w_t = jnp.transpose(weight, (2, 0, 1))
    w_t = jnp.pad(w_t, ((0, 0), (0, O_pad - O), (0, 0)))
    b2d = jnp.pad(bias, (0, O_pad - O)).astype(jnp.float32).reshape(O_pad, 1)

    if compute_dtype is not None:
        cdt = jnp.dtype(compute_dtype)
        x_p = x_p.astype(cdt)
        w_t = w_t.astype(cdt)

    itemsize = x_p.dtype.itemsize
    # Explicit VMEM budget (double-buffered blocks) -> safe on v7x's smaller VMEM.
    vmem_needed = 2 * (C * T_total * itemsize
                       + k * O_pad * C * itemsize
                       + O_pad * 4
                       + O_pad * TT * 4) + (1 << 20)
    vmem_limit = int(min(max(2 * vmem_needed, 8 << 20), 64 << 20))

    cost = pl.CostEstimate(
        flops=2 * N * T_out * O * C * k,
        transcendentals=0,
        bytes_accessed=int(x_p.size * itemsize + w_t.size * itemsize
                           + b2d.size * 4 + N * O_pad * T_out_pad * out_dtype.itemsize),
    )

    kernel = functools.partial(
        _conv1d_relu_kernel, k=k, stride=stride, tt=TT, win=win, apply_relu=apply_relu)

    out = pl.pallas_call(
        kernel,
        out_shape=jax.ShapeDtypeStruct((N, O_pad, T_out_pad), out_dtype),
        grid=(N, n_t),
        in_specs=[
            pl.BlockSpec((None, C, T_total), lambda n, t: (n, 0, 0)),   # x row, resident over t
            pl.BlockSpec((k, O_pad, C), lambda n, t: (0, 0, 0)),        # weights, resident
            pl.BlockSpec((O_pad, 1), lambda n, t: (0, 0)),              # bias, resident
        ],
        out_specs=pl.BlockSpec((None, O_pad, TT), lambda n, t: (n, 0, t)),
        compiler_params=pltpu.CompilerParams(
            dimension_semantics=("parallel", "parallel"),
            vmem_limit_bytes=vmem_limit,
        ),
        cost_estimate=cost,
    )(x_p, w_t, b2d)

    # Slice off alignment padding; already NCT layout (no transpose needed).
    return out[:, :O, :T_out]


def _reference(x, weight, bias, kernel_shape, stride):
    # Pure-JAX reference with the same TF-style 'same' padding.
    N, C, T = x.shape
    pad_t = _compute_pad(T, kernel_shape, stride)
    pad_f = pad_t // 2
    pad_b = pad_t - pad_f
    y = lax.conv_general_dilated(
        x, weight,
        window_strides=(stride,),
        padding=[(pad_f, pad_b)],
        dimension_numbers=("NCH", "OIH", "NCH"),
    )
    y = y + bias.reshape(1, -1, 1)
    return jnp.maximum(y, 0.0)


if __name__ == "__main__":
    N, C_in, C_out, T = 2, 4, 8, 16
    kernel_shape, stride = 3, 1

    key = jax.random.PRNGKey(0)
    kx, kw, kb = jax.random.split(key, 3)
    x = jax.random.normal(kx, (N, C_in, T), dtype=jnp.float32)
    weight = 0.1 * jax.random.normal(kw, (C_out, C_in, kernel_shape), dtype=jnp.float32)
    bias = 0.1 * jax.random.normal(kb, (C_out,), dtype=jnp.float32)

    # f32 path
    out = unit1d_forward(x, weight, bias, kernel_shape=kernel_shape, stride=stride,
                         padding="same")
    out = jax.block_until_ready(out)

    ref = _reference(x, weight, bias, kernel_shape, stride)
    assert out.shape == ref.shape, (out.shape, ref.shape)
    assert jnp.allclose(out, ref, atol=1e-5, rtol=1e-5), "f32 mismatch vs reference"

    # bf16 MXU path (native rate on v5e/v6e/v7x), f32 accumulation; looser tolerance.
    out_bf16 = unit1d_forward(x, weight, bias, kernel_shape=kernel_shape, stride=stride,
                              padding="same", compute_dtype="bfloat16")
    out_bf16 = jax.block_until_ready(out_bf16)
    assert float(jnp.max(jnp.abs(out_bf16 - ref))) < 5e-2, "bf16 mismatch vs reference"

    print("KERNEL_OK")
</pallas_src>

<mosaic_0001>
module attributes {stable_mosaic.version = 11 : i64} {
  func.func @_conv1d_relu_kernel(%arg0: i32, %arg1: i32, %arg2: memref<1x4x256xf32, #tpu.memory_space<vmem>>, %arg3: memref<3x8x4xf32, #tpu.memory_space<vmem>>, %arg4: memref<8x1xf32, #tpu.memory_space<vmem>>, %arg5: memref<1x8x128xf32, #tpu.memory_space<vmem>>) attributes {dimension_semantics = [#tpu.dimension_semantics<parallel>, #tpu.dimension_semantics<parallel>], iteration_bounds = array<i64: 2, 1>, scalar_prefetch = 0 : i64, scratch_operands = 0 : i64, tpu.core_type = #tpu.core_type<tc>, window_params = [{transform_indices = @transform_0, window_bounds = array<i64: 1, 4, 256>}, {pipeline_mode = #tpu.pipeline_mode<synchronous>, transform_indices = @transform_1, window_bounds = array<i64: 3, 8, 4>}, {pipeline_mode = #tpu.pipeline_mode<synchronous>, transform_indices = @transform_2, window_bounds = array<i64: 8, 1>}, {transform_indices = @transform_3, window_bounds = array<i64: 1, 8, 128>}]} {
    %c128_i32 = arith.constant 128 : i32
    %0 = arith.muli %arg1, %c128_i32 : i32
    %1 = tpu.assume_multiple %0, 128 : i32
    %c0 = arith.constant 0 : index
    %c0_0 = arith.constant 0 : index
    %2 = arith.index_cast %1 : i32 to index
    %3 = vector.load %arg2[%c0, %c0_0, %2] : memref<1x4x256xf32, #tpu.memory_space<vmem>>, vector<1x4x256xf32>
    %4 = vector.shape_cast %3 : vector<1x4x256xf32> to vector<4x256xf32>
    %5 = vector.extract_strided_slice %4 {offsets = [0, 0], sizes = [4, 128], strides = [1, 1]} : vector<4x256xf32> to vector<4x128xf32>
    %c0_1 = arith.constant 0 : index
    %c0_2 = arith.constant 0 : index
    %c0_3 = arith.constant 0 : index
    %6 = vector.load %arg3[%c0_1, %c0_2, %c0_3] : memref<3x8x4xf32, #tpu.memory_space<vmem>>, vector<1x8x4xf32>
    %7 = vector.shape_cast %6 : vector<1x8x4xf32> to vector<8x4xf32>
    %cst = arith.constant dense<0.000000e+00> : vector<8x128xf32>
    %8 = tpu.matmul %7, %5, %cst {dimension_numbers = #tpu.dot_dimension_numbers<[1], [0], [0], [1], [0, 0, 1, 1], [], []>} : vector<8x4xf32>, vector<4x128xf32>, vector<8x128xf32> -> vector<8x128xf32>
    %9 = vector.extract_strided_slice %4 {offsets = [0, 1], sizes = [4, 128], strides = [1, 1]} : vector<4x256xf32> to vector<4x128xf32>
    %c1 = arith.constant 1 : index
    %c0_4 = arith.constant 0 : index
    %c0_5 = arith.constant 0 : index
    %10 = vector.load %arg3[%c1, %c0_4, %c0_5] : memref<3x8x4xf32, #tpu.memory_space<vmem>>, vector<1x8x4xf32>
    %11 = vector.shape_cast %10 : vector<1x8x4xf32> to vector<8x4xf32>
    %cst_6 = arith.constant dense<0.000000e+00> : vector<8x128xf32>
    %12 = tpu.matmul %11, %9, %cst_6 {dimension_numbers = #tpu.dot_dimension_numbers<[1], [0], [0], [1], [0, 0, 1, 1], [], []>} : vector<8x4xf32>, vector<4x128xf32>, vector<8x128xf32> -> vector<8x128xf32>
    %13 = arith.addf %8, %12 : vector<8x128xf32>
    %14 = vector.extract_strided_slice %4 {offsets = [0, 2], sizes = [4, 128], strides = [1, 1]} : vector<4x256xf32> to vector<4x128xf32>
    %c2 = arith.constant 2 : index
    %c0_7 = arith.constant 0 : index
    %c0_8 = arith.constant 0 : index
    %15 = vector.load %arg3[%c2, %c0_7, %c0_8] : memref<3x8x4xf32, #tpu.memory_space<vmem>>, vector<1x8x4xf32>
    %16 = vector.shape_cast %15 : vector<1x8x4xf32> to vector<8x4xf32>
    %cst_9 = arith.constant dense<0.000000e+00> : vector<8x128xf32>
    %17 = tpu.matmul %16, %14, %cst_9 {dimension_numbers = #tpu.dot_dimension_numbers<[1], [0], [0], [1], [0, 0, 1, 1], [], []>} : vector<8x4xf32>, vector<4x128xf32>, vector<8x128xf32> -> vector<8x128xf32>
    %18 = arith.addf %13, %17 : vector<8x128xf32>
    %c0_10 = arith.constant 0 : index
    %c0_11 = arith.constant 0 : index
    %19 = vector.load %arg4[%c0_10, %c0_11] : memref<8x1xf32, #tpu.memory_space<vmem>>, vector<8x1xf32>
    %20 = vector.broadcast %19 : vector<8x1xf32> to vector<8x128xf32>
    %21 = arith.addf %18, %20 : vector<8x128xf32>
    %cst_12 = arith.constant 0.000000e+00 : f32
    %22 = vector.broadcast %cst_12 : f32 to vector<8x128xf32>
    %23 = arith.maximumf %21, %22 : vector<8x128xf32>
    %c0_13 = arith.constant 0 : index
    %c0_14 = arith.constant 0 : index
    %c0_15 = arith.constant 0 : index
    %24 = vector.load %arg5[%c0_13, %c0_14, %c0_15] : memref<1x8x128xf32, #tpu.memory_space<vmem>>, vector<1x8x128xf32>
    %25 = vector.shape_cast %24 : vector<1x8x128xf32> to vector<8x128xf32>
    %26 = vector.shape_cast %23 : vector<8x128xf32> to vector<1x8x128xf32>
    tpu.vector_store %arg5[%c0_13, %c0_14, %c0_15], %26 {strides = array<i32>} : memref<1x8x128xf32, #tpu.memory_space<vmem>>, vector<1x8x128xf32>,
    return
  }
  func.func @transform_0(%arg0: i32, %arg1: i32) -> (i32, i32, i32) {
    %c0_i32 = arith.constant 0 : i32
    %c0_i32_0 = arith.constant 0 : i32
    %c0_i32_1 = arith.constant 0 : i32
    return %arg0, %c0_i32, %c0_i32_0 : i32, i32, i32
  }
  func.func @transform_1(%arg0: i32, %arg1: i32) -> (i32, i32, i32) {
    %c0_i32 = arith.constant 0 : i32
    %c0_i32_0 = arith.constant 0 : i32
    %c0_i32_1 = arith.constant 0 : i32
    %c0_i32_2 = arith.constant 0 : i32
    return %c0_i32, %c0_i32_0, %c0_i32_1 : i32, i32, i32
  }
  func.func @transform_2(%arg0: i32, %arg1: i32) -> (i32, i32) {
    %c0_i32 = arith.constant 0 : i32
    %c0_i32_0 = arith.constant 0 : i32
    %c0_i32_1 = arith.constant 0 : i32
    return %c0_i32, %c0_i32_0 : i32, i32
  }
  func.func @transform_3(%arg0: i32, %arg1: i32) -> (i32, i32, i32) {
    %c0_i32 = arith.constant 0 : i32
    %c0_i32_0 = arith.constant 0 : i32
    return %arg0, %c0_i32, %arg1 : i32, i32, i32
  }
}

</mosaic_0001>

<llo_original>
// kernel: unit1d_forward.1
$region0: #{unit1d_forward.1}
  #allocation0 [shape = 'u32[]', space=smem, size = 0x4, offset = 0x4, fixed_abs, tag = 'smem constant byte address 0x4 - core index']
  #allocation1 [shape = 'u32[144,128]{1,0:T(1,128)}', space=vmem, size = 0x12000, scoped, tag = 'internal scratch']
  %s0 = inlined_call_operand.vmem [shape: f32[2,4,256], index: 0, kind: input, shape index: {}]
  %s1 = inlined_call_operand.vmem [shape: f32[3,8,4], index: 1, kind: input, shape index: {}]
  %s2 = inlined_call_operand.vmem [shape: f32[8,1], index: 2, kind: input, shape index: {}]
  %s3 = inlined_call_operand.hbm [shape: f32[2,8,128], index: 3, kind: output, shape index: {}]
  %s4 = sld [smem:[#allocation0]]
  $region45: #{unit1d_forward.1} parent=0
    _
  %s6 = ssub.s32 1, %s4
  %s7 = scalar_select 0, %s6, %s4
  $region1: #{unit1d_forward.1} parent=0
    #allocation2 [shape = 'u8[8192]{0}', space=vmem, size = 0x2000, scoped, tag = 'output window, operand 0']
    #allocation3 [shape = 's32[2]{0}', space=sflag, size = 0x8, scoped, tag = 'scoped memory for unit1d_forward.1']
    %8 = vsyncpa [#allocation3], 0
    %s9 = scalar_lea.sflag [#allocation3], 1
    %10 = vsyncpa %s9, 0
    loop: start=0, step=1, limit=4
    $region2: #{unit1d_forward.1} parent=1 // loop_pre_header
      _
    $region3: #{unit1d_forward.1} parent=1 // loop_header
      %s12 = sphi 0, %s16
      %p13 = scmp.ge.s32.totalorder %s12, 4
      %s19 = sphi 0, %s31
      %s20 = sphi 0, %s27
      %s21 = sphi 0, %s19
      %s22 = sphi 0, %s20
      %s23 = sphi 0, %s21
      %s24 = sphi 0, %s22
      %s34 = sphi 0, %s36
      %s37 = sphi 0, %s34
      %s38 = sphi 0, %s37
      %s54 = sphi 0, %s38
      %s58 = sphi 0, %s58
      %s60 = sphi 0, %s58
      %s61 = sphi 0, %s60
      %s75 = sphi 0, %s61
      %s79 = sphi 0, %s79
      %s81 = sphi 0, %s79
      %s82 = sphi 0, %s81
      %s96 = sphi 0, %s82
      %s104 = sphi 0, %s106
      %s107 = sphi 0, %s104
      %s108 = sphi 0, %s107
      %s124 = sphi 0, %s108
    $region4: #{unit1d_forward.1} parent=1 // loop_header_branch
      %15 = sbr.rel (%p13) target = $region8
    $region5: #{unit1d_forward.1} parent=1 // loop_body
      %s17 = ssub.s32 %s12, 1
      %s18 = ssub.s32 %s12, 2
      %s25 = sadd.s32 1, %s20
      %p26 = scmp.ge.s32.totalorder %s25, 1
      %s27 = scalar_select %p26, 0, %s25
      %s28 = sadd.s32 1, %s19
      %s29 = scalar_select %p26, %s28, %s19
      %p30 = scmp.ge.s32.totalorder %s29, 2
      %s31 = scalar_select %p30, 0, %s29
      %s32 = ssub.s32 %s19, %s31
      %p33 = scmp.eq.s32.totalorder %s32, 0
      %s35 = sadd.s32 %s34, 1
      %s36 = scalar_select %p33, %s34, %s35
      %p39 = pneg %p33
      %p40 = scmp.eq.s32.totalorder %s12, 1
      %p41 = por %p39, %p40
      %p42 = scmp.ne.s32.totalorder %s34, %s37
      %p43 = scmp.eq.s32.totalorder %s12, 0
      %p44 = por %p42, %p43
      %p45 = scmp.ne.s32.totalorder %s34, %s37
      %p46 = scmp.eq.s32.totalorder %s17, 1
      %p47 = por %p45, %p46
      %p48 = scmp.ne.s32.totalorder %s37, %s38
      %p49 = scmp.eq.s32.totalorder %s17, 0
      %p50 = por %p48, %p49
      %p51 = scmp.ne.s32.totalorder %s37, %s38
      %p52 = scmp.eq.s32.totalorder %s18, 1
      %p53 = por %p51, %p52
      %p55 = scmp.ne.s32.totalorder %s38, %s54
      %p56 = scmp.eq.s32.totalorder %s18, 0
      %p57 = por %p55, %p56
      %s59 = sadd.s32 %s58, 1
      %p62 = scmp.eq.s32.totalorder %s12, 1
      %p63 = scmp.ne.s32.totalorder %s58, %s60
      %p64 = scmp.eq.s32.totalorder %s12, 0
      %p65 = por %p63, %p64
      %p66 = scmp.ne.s32.totalorder %s58, %s60
      %p67 = scmp.eq.s32.totalorder %s17, 1
      %p68 = por %p66, %p67
      %p69 = scmp.ne.s32.totalorder %s60, %s61
      %p70 = scmp.eq.s32.totalorder %s17, 0
      %p71 = por %p69, %p70
      %p72 = scmp.ne.s32.totalorder %s60, %s61
      %p73 = scmp.eq.s32.totalorder %s18, 1
      %p74 = por %p72, %p73
      %p76 = scmp.ne.s32.totalorder %s61, %s75
      %p77 = scmp.eq.s32.totalorder %s18, 0
      %p78 = por %p76, %p77
      %s80 = sadd.s32 %s79, 1
      %p83 = scmp.eq.s32.totalorder %s12, 1
      %p84 = scmp.ne.s32.totalorder %s79, %s81
      %p85 = scmp.eq.s32.totalorder %s12, 0
      %p86 = por %p84, %p85
      %p87 = scmp.ne.s32.totalorder %s79, %s81
      %p88 = scmp.eq.s32.totalorder %s17, 1
      %p89 = por %p87, %p88
      %p90 = scmp.ne.s32.totalorder %s81, %s82
      %p91 = scmp.eq.s32.totalorder %s17, 0
      %p92 = por %p90, %p91
      %p93 = scmp.ne.s32.totalorder %s81, %s82
      %p94 = scmp.eq.s32.totalorder %s18, 1
      %p95 = por %p93, %p94
      %p97 = scmp.ne.s32.totalorder %s82, %s96
      %p98 = scmp.eq.s32.totalorder %s18, 0
      %p99 = por %p97, %p98
      %s100 = ssub.s32 %s19, %s31
      %s101 = ssub.s32 %s20, %s27
      %s102 = sor.u32 %s100, %s101
      %p103 = scmp.eq.s32.totalorder %s102, 0
      %s105 = sadd.s32 %s104, 1
      %s106 = scalar_select %p103, %s104, %s105
      %p109 = pneg %p103
      %p110 = scmp.eq.s32.totalorder %s12, 1
      %p111 = por %p109, %p110
      %p112 = scmp.ne.s32.totalorder %s104, %s107
      %p113 = scmp.eq.s32.totalorder %s12, 0
      %p114 = por %p112, %p113
      %p115 = scmp.ne.s32.totalorder %s104, %s107
      %p116 = scmp.eq.s32.totalorder %s17, 1
      %p117 = por %p115, %p116
      %p118 = scmp.ne.s32.totalorder %s107, %s108
      %p119 = scmp.eq.s32.totalorder %s17, 0
      %p120 = por %p118, %p119
      %p121 = scmp.ne.s32.totalorder %s107, %s108
      %p122 = scmp.eq.s32.totalorder %s18, 1
      %p123 = por %p121, %p122
      %p125 = scmp.ne.s32.totalorder %s108, %s124
      %p126 = scmp.eq.s32.totalorder %s18, 0
      %p127 = por %p125, %p126
      %p128 = scmp.le.s32.totalorder 1, %s12
      %p129 = scmp.lt.s32.totalorder %s12, 3
      %p130 = pnand %p128, %p129
      %p131 = pneg %p130
      // Predicated region
      $region9: #{unit1d_forward.1} parent=5 // pred_check
        _
      $region10: #{unit1d_forward.1} parent=5 // pred_check_branch
        %133 = sbr.rel (%p130) target = $region12
      $region11: #{unit1d_forward.1} parent=5 // pred_region
        %s134 = ssub.s32 %s12, 1
        // Predicated region
        $region13: #{unit1d_forward.1} parent=11 // pred_check
          %p135 = pneg %p71
        $region14: #{unit1d_forward.1} parent=11 // pred_check_branch
          %137 = sbr.rel (%p135) target = $region16
        $region15: #{unit1d_forward.1} parent=11 // pred_region
          _
        $region16: #{unit1d_forward.1} parent=11 // pred_fallthru
          _
        // Predicated region
        $region17: #{unit1d_forward.1} parent=11 // pred_check
          %p138 = pneg %p92
        $region18: #{unit1d_forward.1} parent=11 // pred_check_branch
          %140 = sbr.rel (%p138) target = $region20
        $region19: #{unit1d_forward.1} parent=11 // pred_region
          _
        $region20: #{unit1d_forward.1} parent=11 // pred_fallthru
          _
      $region12: #{unit1d_forward.1} parent=5 // pred_fallthru
        _
      %p141 = scmp.lt.s32.totalorder %s12, 2
      // Predicated region
      $region21: #{unit1d_forward.1} parent=5 // pred_check
        %p142 = pneg %p141
      $region22: #{unit1d_forward.1} parent=5 // pred_check_branch
        %144 = sbr.rel (%p142) target = $region24
      $region23: #{unit1d_forward.1} parent=5 // pred_region
        // Predicated region
        $region25: #{unit1d_forward.1} parent=23 // pred_check
          %p145 = pneg %p44
        $region26: #{unit1d_forward.1} parent=23 // pred_check_branch
          %147 = sbr.rel (%p145) target = $region28
        $region27: #{unit1d_forward.1} parent=23 // pred_region
          %p148 = scmp.lt.s32.totalorder %s19, 1
          %s149 = scalar_select %p148, %s19, 1
          %s150 = smul.addr %s149, 2
          %s151 = smul.addr %s150, 4
          %s152 = scalar_lea.vmem %s0, %s151
        $region28: #{unit1d_forward.1} parent=23 // pred_fallthru
          _
      $region24: #{unit1d_forward.1} parent=5 // pred_fallthru
        _
      %p153 = scmp.le.s32.totalorder 1, %s12
      %p154 = scmp.lt.s32.totalorder %s12, 3
      %p155 = pnand %p153, %p154
      %p156 = pneg %p155
      // Predicated region
      $region29: #{unit1d_forward.1} parent=5 // pred_check
        _
      $region30: #{unit1d_forward.1} parent=5 // pred_check_branch
        %158 = sbr.rel (%p155) target = $region32
      $region31: #{unit1d_forward.1} parent=5 // pred_region
        %s159 = ssub.s32 %s12, 1
        %p160 = scmp.lt.s32.totalorder %s21, 1
        %s161 = scalar_select %p160, %s21, 1
        %s162 = smul.addr %s161, 2
        %s163 = smul.addr %s162, 4
        %s164 = scalar_lea.vmem %s0, %s163
        %p165 = pneg %p50
        %p166 = pneg %p47
        %p167 = pneg %p71
        %p168 = pneg %p68
        %p169 = pneg %p92
        %p170 = pneg %p89
        %p171 = pneg %p120
        %p172 = pneg %p117
        %s173 = sand.u32 %s107, 1
        %s174 = scalar_lea.sflag [#allocation3], %s173
        %s175 = sand.u32 %s107, 1
        %s176 = smul.addr %s175, 8
        %s177 = scalar_lea.vmem [#allocation2], %s176
        %p178 = scmp.lt.s32.totalorder %s21, 1
        %s179 = scalar_select %p178, %s21, 1
        %s180 = smul.addr %s179, 2
        %s181 = smul.addr %s180, 4
        %s182 = scalar_lea.vmem %s0, %s181
        %s183 = smul.u32 %s22, 128
        %s184 = sshra.s32 %s183, 7
        %s185 = sand.u32 %s183, 127
        %s186 = smul.addr %s184, 4
        %s187 = scalar_lea.vmem %s182, %s186
        %v188 = vld [vmem:[%s187] sm:$0xff]
        %v189 = vld [vmem:[%s1] sm:$0xff]
        %s190 = scalar_lea.vmem %s1, 8
        %v191 = vld [vmem:[%s190] sm:$0xff]
        %v193 = vcombine.high %v188, %v188
        %194 = vrot.lane.b32.xlu0 %v188, 127
        %v195 = vpop.permute.xlu0 %194
        %196 = vrot.lane.b32.xlu0 %v193, 127
        %v197 = vpop.permute.xlu0 %196
        %vm198 = vcmask 1039360
        %v199 = vsel %vm198, %v195, %v197
        %vm200 = vcmask 31744
        %v202 = vsel %vm200, %v191, 0
        %vm204 = vcmask 1043456
        %v205 = vsel %vm204, %v199, 0
        %207 = vmatprep.subr.mxu0 0.0
        %208 = vmatpush1.msra.mxu0 %v205
        %209 = vmatprep.subr.mxu0 0.0
        %210 = vmatpush1.msra.mxu0 0.0
        %211 = vmatprep.subr.mxu0 0.0
        %212 = vmatpush1.msra.mxu0 0.0
        %213 = vmatprep.subr.mxu0 0.0
        %214 = vmatpush1.msra.mxu0 0.0
        %215 = vmatprep.subr.mxu0 0.0
        %216 = vmatpush1.msra.mxu0 0.0
        %217 = vmatprep.subr.mxu0 0.0
        %218 = vmatpush1.msra.mxu0 0.0
        %219 = vmatprep.subr.mxu0 0.0
        %220 = vmatpush1.msra.mxu0 0.0
        %221 = vmatprep.subr.mxu0 0.0
        %222 = vmatpush1.msra.mxu0 0.0
        %223 = vmatprep.subr.mxu0 0.0
        %224 = vmatpush1.msra.mxu0 0.0
        %225 = vmatprep.subr.mxu0 0.0
        %226 = vmatpush1.msra.mxu0 0.0
        %227 = vmatprep.subr.mxu0 0.0
        %228 = vmatpush1.msra.mxu0 0.0
        %229 = vmatprep.subr.mxu0 0.0
        %230 = vmatpush1.msra.mxu0 0.0
        %231 = vmatprep.subr.mxu0 0.0
        %232 = vmatpush1.msra.mxu0 0.0
        %233 = vmatprep.subr.mxu0 0.0
        %234 = vmatpush1.msra.mxu0 0.0
        %235 = vmatprep.subr.mxu0 0.0
        %236 = vmatpush1.msra.mxu0 0.0
        %237 = vmatprep.subr.mxu0 0.0
        %238 = vmatpush1.msra.mxu0 0.0
        %239 = vmatprep.subr.mxu0 0.0
        %240 = vmatpush1.msra.mxu0 0.0
        %241 = vmatprep.subr.mxu0 0.0
        %242 = vmatpush1.msra.mxu0 0.0
        %243 = vmatprep.subr.mxu0 0.0
        %244 = vmatpush1.msra.mxu0 0.0
        %245 = vmatprep.subr.mxu0 0.0
        %246 = vmatpush1.msra.mxu0 0.0
        %247 = vmatprep.subr.mxu0 0.0
        %248 = vmatpush1.msra.mxu0 0.0
        %249 = vmatprep.subr.mxu0 0.0
        %250 = vmatpush1.msra.mxu0 0.0
        %251 = vmatprep.subr.mxu0 0.0
        %252 = vmatpush1.msra.mxu0 0.0
        %253 = vmatprep.subr.mxu0 0.0
        %254 = vmatpush1.msra.mxu0 0.0
        %255 = vmatprep.subr.mxu0 0.0
        %256 = vmatpush1.msra.mxu0 0.0
        %257 = vmatprep.subr.mxu0 0.0
        %258 = vmatpush1.msra.mxu0 0.0
        %259 = vmatprep.subr.mxu0 0.0
        %260 = vmatpush1.msra.mxu0 0.0
        %261 = vmatprep.subr.mxu0 0.0
        %262 = vmatpush1.msra.mxu0 0.0
        %263 = vmatprep.subr.mxu0 0.0
        %264 = vmatpush1.msra.mxu0 0.0
        %265 = vmatprep.subr.mxu0 0.0
        %266 = vmatpush1.msra.mxu0 0.0
        %267 = vmatprep.subr.mxu0 0.0
        %268 = vmatpush1.msra.mxu0 0.0
        %269 = vmatprep.subr.mxu0 0.0
        %270 = vmatpush1.msra.mxu0 0.0
        %271 = vmatprep.mubr.f32.mxu0 0.0
        %272 = vmatmul.mubr.f32.gmra.mrb[0].mxu0 %v202
        %v273 = vpop.f32.mrb[0].mxu0
        %v274 = vadd.f32 0.0, %v273
        %v275 = vpop.f32.mrb[0].mxu0
        %276 = vdwg.mxu0
        %v278 = vsel %vm200, %v189, 0
        %v280 = vsel %vm204, %v188, 0
        %282 = vmatprep.subr.mxu0 0.0
        %283 = vmatpush1.msra.mxu0 %v280
        %284 = vmatprep.subr.mxu0 0.0
        %285 = vmatpush1.msra.mxu0 0.0
        %286 = vmatprep.subr.mxu0 0.0
        %287 = vmatpush1.msra.mxu0 0.0
        %288 = vmatprep.subr.mxu0 0.0
        %289 = vmatpush1.msra.mxu0 0.0
        %290 = vmatprep.subr.mxu0 0.0
        %291 = vmatpush1.msra.mxu0 0.0
        %292 = vmatprep.subr.mxu0 0.0
        %293 = vmatpush1.msra.mxu0 0.0
        %294 = vmatprep.subr.mxu0 0.0
        %295 = vmatpush1.msra.mxu0 0.0
        %296 = vmatprep.subr.mxu0 0.0
        %297 = vmatpush1.msra.mxu0 0.0
        %298 = vmatprep.subr.mxu0 0.0
        %299 = vmatpush1.msra.mxu0 0.0
        %300 = vmatprep.subr.mxu0 0.0
        %301 = vmatpush1.msra.mxu0 0.0
        %302 = vmatprep.subr.mxu0 0.0
        %303 = vmatpush1.msra.mxu0 0.0
        %304 = vmatprep.subr.mxu0 0.0
        %305 = vmatpush1.msra.mxu0 0.0
        %306 = vmatprep.subr.mxu0 0.0
        %307 = vmatpush1.msra.mxu0 0.0
        %308 = vmatprep.subr.mxu0 0.0
        %309 = vmatpush1.msra.mxu0 0.0
        %310 = vmatprep.subr.mxu0 0.0
        %311 = vmatpush1.msra.mxu0 0.0
        %312 = vmatprep.subr.mxu0 0.0
        %313 = vmatpush1.msra.mxu0 0.0
        %314 = vmatprep.subr.mxu0 0.0
        %315 = vmatpush1.msra.mxu0 0.0
        %316 = vmatprep.subr.mxu0 0.0
        %317 = vmatpush1.msra.mxu0 0.0
        %318 = vmatprep.subr.mxu0 0.0
        %319 = vmatpush1.msra.mxu0 0.0
        %320 = vmatprep.subr.mxu0 0.0
        %321 = vmatpush1.msra.mxu0 0.0
        %322 = vmatprep.subr.mxu0 0.0
        %323 = vmatpush1.msra.mxu0 0.0
        %324 = vmatprep.subr.mxu0 0.0
        %325 = vmatpush1.msra.mxu0 0.0
        %326 = vmatprep.subr.mxu0 0.0
        %327 = vmatpush1.msra.mxu0 0.0
        %328 = vmatprep.subr.mxu0 0.0
        %329 = vmatpush1.msra.mxu0 0.0
        %330 = vmatprep.subr.mxu0 0.0
        %331 = vmatpush1.msra.mxu0 0.0
        %332 = vmatprep.subr.mxu0 0.0
        %333 = vmatpush1.msra.mxu0 0.0
        %334 = vmatprep.subr.mxu0 0.0
        %335 = vmatpush1.msra.mxu0 0.0
        %336 = vmatprep.subr.mxu0 0.0
        %337 = vmatpush1.msra.mxu0 0.0
        %338 = vmatprep.subr.mxu0 0.0
        %339 = vmatpush1.msra.mxu0 0.0
        %340 = vmatprep.subr.mxu0 0.0
        %341 = vmatpush1.msra.mxu0 0.0
        %342 = vmatprep.subr.mxu0 0.0
        %343 = vmatpush1.msra.mxu0 0.0
        %344 = vmatprep.subr.mxu0 0.0
        %345 = vmatpush1.msra.mxu0 0.0
        %346 = vmatprep.mubr.f32.mxu0 0.0
        %347 = vmatmul.mubr.f32.gmra.mrb[0].mxu0 %v278
        %v348 = vpop.f32.mrb[0].mxu0
        %v349 = vadd.f32 %v274, %v348
        %v350 = vpop.f32.mrb[0].mxu0
        %351 = vdwg.mxu0
        %s352 = scalar_lea.vmem %s1, 16
        %v353 = vld [vmem:[%s352] sm:$0xff]
        %354 = vrot.lane.b32.xlu0 %v188, 126
        %v355 = vpop.permute.xlu0 %354
        %356 = vrot.lane.b32.xlu0 %v193, 126
        %v357 = vpop.permute.xlu0 %356
        %vm358 = vcmask 1031168
        %v359 = vsel %vm358, %v355, %v357
        %v361 = vsel %vm200, %v353, 0
        %v363 = vsel %vm204, %v359, 0
        %365 = vmatprep.subr.mxu0 0.0
        %366 = vmatpush1.msra.mxu0 %v363
        %367 = vmatprep.subr.mxu0 0.0
        %368 = vmatpush1.msra.mxu0 0.0
        %369 = vmatprep.subr.mxu0 0.0
        %370 = vmatpush1.msra.mxu0 0.0
        %371 = vmatprep.subr.mxu0 0.0
        %372 = vmatpush1.msra.mxu0 0.0
        %373 = vmatprep.subr.mxu0 0.0
        %374 = vmatpush1.msra.mxu0 0.0
        %375 = vmatprep.subr.mxu0 0.0
        %376 = vmatpush1.msra.mxu0 0.0
        %377 = vmatprep.subr.mxu0 0.0
        %378 = vmatpush1.msra.mxu0 0.0
        %379 = vmatprep.subr.mxu0 0.0
        %380 = vmatpush1.msra.mxu0 0.0
        %381 = vmatprep.subr.mxu0 0.0
        %382 = vmatpush1.msra.mxu0 0.0
        %383 = vmatprep.subr.mxu0 0.0
        %384 = vmatpush1.msra.mxu0 0.0
        %385 = vmatprep.subr.mxu0 0.0
        %386 = vmatpush1.msra.mxu0 0.0
        %387 = vmatprep.subr.mxu0 0.0
        %388 = vmatpush1.msra.mxu0 0.0
        %389 = vmatprep.subr.mxu0 0.0
        %390 = vmatpush1.msra.mxu0 0.0
        %391 = vmatprep.subr.mxu0 0.0
        %392 = vmatpush1.msra.mxu0 0.0
        %393 = vmatprep.subr.mxu0 0.0
        %394 = vmatpush1.msra.mxu0 0.0
        %395 = vmatprep.subr.mxu0 0.0
        %396 = vmatpush1.msra.mxu0 0.0
        %397 = vmatprep.subr.mxu0 0.0
        %398 = vmatpush1.msra.mxu0 0.0
        %399 = vmatprep.subr.mxu0 0.0
        %400 = vmatpush1.msra.mxu0 0.0
        %401 = vmatprep.subr.mxu0 0.0
        %402 = vmatpush1.msra.mxu0 0.0
        %403 = vmatprep.subr.mxu0 0.0
        %404 = vmatpush1.msra.mxu0 0.0
        %405 = vmatprep.subr.mxu0 0.0
        %406 = vmatpush1.msra.mxu0 0.0
        %407 = vmatprep.subr.mxu0 0.0
        %408 = vmatpush1.msra.mxu0 0.0
        %409 = vmatprep.subr.mxu0 0.0
        %410 = vmatpush1.msra.mxu0 0.0
        %411 = vmatprep.subr.mxu0 0.0
        %412 = vmatpush1.msra.mxu0 0.0
        %413 = vmatprep.subr.mxu0 0.0
        %414 = vmatpush1.msra.mxu0 0.0
        %415 = vmatprep.subr.mxu0 0.0
        %416 = vmatpush1.msra.mxu0 0.0
        %417 = vmatprep.subr.mxu0 0.0
        %418 = vmatpush1.msra.mxu0 0.0
        %419 = vmatprep.subr.mxu0 0.0
        %420 = vmatpush1.msra.mxu0 0.0
        %421 = vmatprep.subr.mxu0 0.0
        %422 = vmatpush1.msra.mxu0 0.0
        %423 = vmatprep.subr.mxu0 0.0
        %424 = vmatpush1.msra.mxu0 0.0
        %425 = vmatprep.subr.mxu0 0.0
        %426 = vmatpush1.msra.mxu0 0.0
        %427 = vmatprep.subr.mxu0 0.0
        %428 = vmatpush1.msra.mxu0 0.0
        %429 = vmatprep.mubr.f32.mxu0 0.0
        %430 = vmatmul.mubr.f32.gmra.mrb[0].mxu0 %v361
        %v431 = vpop.f32.mrb[0].mxu0
        %v432 = vadd.f32 0.0, %v431
        %v433 = vpop.f32.mrb[0].mxu0
        %434 = vdwg.mxu0
        %v435 = vadd.f32 %v349, %v432
        %v436 = vld [vmem:[%s2] sm:$0xff]
        %438 = vset.pattern.permute.xlu0 0
        %439 = vperm.xlu0 %438, %v436
        %v440 = vpop.permute.xlu0 %439
        %v442 = vadd.f32 %v435, %v440
        %v443 = vmax.f32 %v442, 0.0
        %444 = vst [vmem:[%s177] sm:$0xff] %v443
        %s445 = sand.u32 %s107, 1
        %s446 = scalar_lea.sflag [#allocation3], %s445
        %s447 = sand.u32 %s107, 1
        %s448 = smul.addr %s447, 8
        %s449 = scalar_lea.vmem [#allocation2], %s448
        // Predicated region
        $region33: #{unit1d_forward.1} parent=31 // pred_check
          %p450 = pneg %p117
        $region34: #{unit1d_forward.1} parent=31 // pred_check_branch
          %452 = sbr.rel (%p450) target = $region36
        $region35: #{unit1d_forward.1} parent=31 // pred_region
          %s454 = ssub.s32 128, 128
          %455 = vsyncadd %s446, %s454
          %s456 = sadd.s32 %s22, %s21
          %s457 = smul.addr %s456, 128
          %s458 = scalar_lea.hbm %s3, %s457
          %s460 = sshll.u32 %s449, 4
          %s461 = int_to_ptr.vmem [resolvable:$true] %s460
          %463 = dma.vmem_to_hbm [thread:$0]  %s461, 128, %s458, %s446
        $region36: #{unit1d_forward.1} parent=31 // pred_fallthru
          _
      $region32: #{unit1d_forward.1} parent=5 // pred_fallthru
        _
      %p464 = scmp.le.s32.totalorder 2, %s12
      // Predicated region
      $region37: #{unit1d_forward.1} parent=5 // pred_check
        %p465 = pneg %p464
      $region38: #{unit1d_forward.1} parent=5 // pred_check_branch
        %467 = sbr.rel (%p465) target = $region40
      $region39: #{unit1d_forward.1} parent=5 // pred_region
        %s468 = ssub.s32 %s12, 2
        // Predicated region
        $region41: #{unit1d_forward.1} parent=39 // pred_check
          %p469 = pneg %p123
        $region42: #{unit1d_forward.1} parent=39 // pred_check_branch
          %471 = sbr.rel (%p469) target = $region44
        $region43: #{unit1d_forward.1} parent=39 // pred_region
          %s472 = sand.u32 %s108, 1
          %s473 = scalar_lea.sflag [#allocation3], %s472
          %s474 = sand.u32 %s108, 1
          %s475 = smul.addr %s474, 8
          %s476 = scalar_lea.vmem [#allocation2], %s475
          %477 = dma.done %s473, 128
        $region44: #{unit1d_forward.1} parent=39 // pred_fallthru
          _
      $region40: #{unit1d_forward.1} parent=5 // pred_fallthru
        _
    $region6: #{unit1d_forward.1} parent=1 // loop_footer
      %s16 = sadd.s32 1, %s12
    $region7: #{unit1d_forward.1} parent=1 // loop_footer_branch
      %11 = sbr.rel target = $region3
    $region8: #{unit1d_forward.1} parent=1 // loop_exit
      _
    %478 = vsyncpa [#allocation3], 1
    %s479 = scalar_lea.sflag [#allocation3], 1
    %480 = vsyncpa %s479, 1

</llo_original>
